<compile_context>
chip_gen: v5e
topology: v5e:2x2
jax: 0.10.0
libtpu: 0.0.40
codegen_flags: <defaults>
</compile_context>

<pallas_src>
import math

import jax
import jax.numpy as jnp
from jax.experimental import pallas as pl
from jax.experimental.pallas import tpu as pltpu


def sae_kernel(x_ref, we_ref, be_ref, wd_ref, bd_ref, act_ref, out_ref, acc_ref):
    # x_ref:   (tile_b, n_input)
    # we_ref:  (n_input, tile_h)     be_ref: (1, tile_h)
    # wd_ref:  (tile_h, n_output)    bd_ref: (1, n_output)
    # act_ref: (tile_b, tile_h)      out_ref: (tile_b, n_output)
    # acc_ref: (tile_b, n_output) f32 VMEM scratch (decoder accumulator)
    j = pl.program_id(1)

    @pl.when(j == 0)
    def _init():
        acc_ref[...] = jnp.zeros_like(acc_ref)

    # Encoder chunk: x @ W_enc[:, j*tile_h : (j+1)*tile_h] + b_enc chunk.
    acts_f32 = (
        jnp.dot(x_ref[...], we_ref[...], preferred_element_type=jnp.float32)
        + be_ref[...].astype(jnp.float32)
    )
    # Store activations in the output dtype; the decoder consumes the SAME
    # (possibly downcast) values so act/out stay mutually consistent.
    acts = acts_f32.astype(act_ref.dtype)
    act_ref[...] = acts

    # Decoder partial: acts_chunk @ W_dec[j*tile_h : (j+1)*tile_h, :],
    # accumulated in f32.
    acc_ref[...] += jnp.dot(acts, wd_ref[...], preferred_element_type=jnp.float32)

    @pl.when(j == pl.num_programs(1) - 1)
    def _finalize():
        out_ref[...] = (acc_ref[...] + bd_ref[...].astype(jnp.float32)).astype(
            out_ref.dtype
        )


def sae_forward(x, w_enc, b_enc, w_dec, b_dec, *, tile_b=256, tile_h=512):
    """SAE forward.

    x:     [B, n_input]
    w_enc: [n_input, n_hidden]   b_enc: [1, n_hidden]
    w_dec: [n_hidden, n_output]  b_dec: [1, n_output]
    Returns (sae_activations [B, n_hidden], output [B, n_output]).
    """
    B, n_input = x.shape
    n_hidden = w_enc.shape[1]
    n_output = w_dec.shape[1]

    # Clamp tiles for small problems; keep (8, 128) alignment otherwise.
    tile_b = min(tile_b, B)
    tile_h = min(tile_h, n_hidden)
    assert B % tile_b == 0, "B must be divisible by tile_b"
    assert n_hidden % tile_h == 0, "n_hidden must be divisible by tile_h"
    assert tile_b == B or tile_b % 8 == 0, "tile_b must be a multiple of 8"
    assert tile_h == n_hidden or tile_h % 128 == 0, "tile_h must be a multiple of 128"

    grid = (B // tile_b, n_hidden // tile_h)

    x_itm = jnp.dtype(x.dtype).itemsize
    w_itm = jnp.dtype(w_enc.dtype).itemsize

    # VMEM budget: double-buffered input/output tiles + f32 accumulator.
    est_bytes = (
        2 * tile_b * n_input * x_itm          # x tile
        + 2 * n_input * tile_h * w_itm        # W_enc chunk
        + 2 * tile_h * w_itm                  # b_enc chunk
        + 2 * tile_h * n_output * w_itm       # W_dec chunk
        + 2 * n_output * w_itm                # b_dec
        + 2 * tile_b * tile_h * x_itm         # act out tile
        + 2 * tile_b * n_output * x_itm       # out tile
        + tile_b * n_output * 4               # f32 accumulator scratch
    )
    assert est_bytes <= 56 * 1024 * 1024, (
        "tile_b/tile_h too large for VMEM (v7x budget); reduce them"
    )
    vmem_limit = int(min(max(2 * est_bytes, 32 * 1024 * 1024), 64 * 1024 * 1024))

    # Advisory cost estimate for the XLA scheduler.
    flops = 2 * B * n_input * n_hidden + 2 * B * n_hidden * n_output
    weight_bytes = w_enc.size * w_itm + b_enc.size * w_itm + w_dec.size * w_itm + b_dec.size * w_itm
    bytes_accessed = (
        B * n_input * x_itm
        + (B // tile_b) * weight_bytes        # weights re-streamed per batch tile
        + B * n_hidden * x_itm                # act writeback
        + B * n_output * x_itm                # out writeback
    )
    cost = pl.CostEstimate(
        flops=flops, transcendentals=0, bytes_accessed=bytes_accessed
    )

    act, out = pl.pallas_call(
        sae_kernel,
        out_shape=(
            jax.ShapeDtypeStruct((B, n_hidden), x.dtype),
            jax.ShapeDtypeStruct((B, n_output), x.dtype),
        ),
        grid_spec=pltpu.PrefetchScalarGridSpec(
            num_scalar_prefetch=0,
            grid=grid,
            in_specs=[
                pl.BlockSpec((tile_b, n_input), lambda i, j: (i, 0)),    # x tile
                pl.BlockSpec((n_input, tile_h), lambda i, j: (0, j)),    # W_enc chunk
                pl.BlockSpec((1, tile_h), lambda i, j: (0, j)),          # b_enc chunk
                pl.BlockSpec((tile_h, n_output), lambda i, j: (j, 0)),   # W_dec chunk
                pl.BlockSpec((1, n_output), lambda i, j: (0, 0)),        # b_dec
            ],
            out_specs=[
                pl.BlockSpec((tile_b, tile_h), lambda i, j: (i, j)),     # activations
                pl.BlockSpec((tile_b, n_output), lambda i, j: (i, 0)),   # output (resident over j)
            ],
            scratch_shapes=[pltpu.VMEM((tile_b, n_output), jnp.float32)],
        ),
        compiler_params=pltpu.CompilerParams(
            dimension_semantics=("parallel", "arbitrary"),
            vmem_limit_bytes=vmem_limit,
        ),
        cost_estimate=cost,
    )(x, w_enc, b_enc, w_dec, b_dec)
    return act, out


def init_sae_params(key, n_input, n_hidden, n_output, dtype=jnp.float32):
    """Deterministic init mirroring nn.Linear shapes.

    PyTorch nn.Linear(in, out) stores weight [out, in]; we keep the transposed
    [in, out] layout so the kernel computes x @ W + b directly.
    """
    k1, k2, k3, k4 = jax.random.split(key, 4)
    bound_e = 1.0 / (n_input ** 0.5)
    bound_d = 1.0 / (n_hidden ** 0.5)
    w_enc = jax.random.uniform(k1, (n_input, n_hidden), dtype, -bound_e, bound_e)
    b_enc = jax.random.uniform(k2, (1, n_hidden), dtype, -bound_e, bound_e)
    w_dec = jax.random.uniform(k3, (n_hidden, n_output), dtype, -bound_d, bound_d)
    b_dec = jax.random.uniform(k4, (1, n_output), dtype, -bound_d, bound_d)
    return w_enc, b_enc, w_dec, b_dec


if __name__ == "__main__":
    # Small-but-lane-dense toy shapes: dims are multiples of 128 so the tiled
    # (hidden-chunked) path and unmasked stores are exercised.
    B, n_input, n_hidden, n_output = 16, 128, 256, 128

    key = jax.random.PRNGKey(0)
    kx, kp = jax.random.split(key)
    x = jax.random.normal(kx, (B, n_input), jnp.float32)
    w_enc, b_enc, w_dec, b_dec = init_sae_params(kp, n_input, n_hidden, n_output)

    # ---- f32 path (tile_b clamped to B=16; 2 hidden chunks of 128) ----------
    act, out = sae_forward(x, w_enc, b_enc, w_dec, b_dec, tile_b=8, tile_h=128)
    jax.block_until_ready((act, out))

    act_ref = x @ w_enc + b_enc
    out_ref = act_ref @ w_dec + b_dec
    assert act.shape == (B, n_hidden) and out.shape == (B, n_output)
    assert jnp.allclose(act, act_ref, atol=2e-4, rtol=2e-4)
    assert jnp.allclose(out, out_ref, atol=2e-4, rtol=2e-4)

    # ---- bf16 streaming path (weights/activations bf16, f32 accumulation) ---
    xb = x.astype(jnp.bfloat16)
    wb_enc, bb_enc, wb_dec, bb_dec = (
        t.astype(jnp.bfloat16) for t in (w_enc, b_enc, w_dec, b_dec)
    )
    act_b, out_b = sae_forward(xb, wb_enc, bb_enc, wb_dec, bb_dec, tile_b=8, tile_h=128)
    jax.block_until_ready((act_b, out_b))

    act_ref_b = (
        xb.astype(jnp.float32) @ wb_enc.astype(jnp.float32)
        + bb_enc.astype(jnp.float32)
    )
    out_ref_b = (
        act_ref_b.astype(jnp.bfloat16).astype(jnp.float32)
        @ wb_dec.astype(jnp.float32)
        + bb_dec.astype(jnp.float32)
    )
    assert jnp.allclose(act_b.astype(jnp.float32), act_ref_b, atol=5e-2, rtol=5e-2)
    assert jnp.allclose(out_b.astype(jnp.float32), out_ref_b, atol=5e-2, rtol=5e-2)

    print("KERNEL_OK")
</pallas_src>

<mosaic_0001>
module attributes {stable_mosaic.version = 11 : i64} {
  func.func @sae_kernel(%arg0: i32, %arg1: i32, %arg2: memref<8x128xf32, #tpu.memory_space<vmem>>, %arg3: memref<128x128xf32, #tpu.memory_space<vmem>>, %arg4: memref<1x128xf32, #tpu.memory_space<vmem>>, %arg5: memref<128x128xf32, #tpu.memory_space<vmem>>, %arg6: memref<1x128xf32, #tpu.memory_space<vmem>>, %arg7: memref<8x128xf32, #tpu.memory_space<vmem>>, %arg8: memref<8x128xf32, #tpu.memory_space<vmem>>, %arg9: memref<8x128xf32, #tpu.memory_space<vmem>>) attributes {dimension_semantics = [#tpu.dimension_semantics<parallel>, #tpu.dimension_semantics<arbitrary>], iteration_bounds = array<i64: 2, 2>, scalar_prefetch = 0 : i64, scratch_operands = 1 : i64, tpu.core_type = #tpu.core_type<tc>, window_params = [{transform_indices = @transform_0, window_bounds = array<i64: 8, 128>}, {transform_indices = @transform_1, window_bounds = array<i64: 128, 128>}, {transform_indices = @transform_2, window_bounds = array<i64: 1, 128>}, {transform_indices = @transform_3, window_bounds = array<i64: 128, 128>}, {pipeline_mode = #tpu.pipeline_mode<synchronous>, transform_indices = @transform_4, window_bounds = array<i64: 1, 128>}, {transform_indices = @transform_5, window_bounds = array<i64: 8, 128>}, {transform_indices = @transform_6, window_bounds = array<i64: 8, 128>}]} {
    %c0_i32 = arith.constant 0 : i32
    %0 = arith.cmpi eq, %arg1, %c0_i32 : i32
    %1 = arith.extui %0 : i1 to i32
    %c0_i32_0 = arith.constant 0 : i32
    %2 = arith.cmpi ne, %1, %c0_i32_0 : i32
    scf.if %2 {
      %cst_16 = arith.constant 0.000000e+00 : f32
      %18 = vector.broadcast %cst_16 : f32 to vector<8x128xf32>
      %c0_17 = arith.constant 0 : index
      %c0_18 = arith.constant 0 : index
      %19 = vector.load %arg9[%c0_17, %c0_18] : memref<8x128xf32, #tpu.memory_space<vmem>>, vector<8x128xf32>
      tpu.vector_store %arg9[%c0_17, %c0_18], %18 {strides = array<i32>} : memref<8x128xf32, #tpu.memory_space<vmem>>, vector<8x128xf32>,
    } else {
    }
    %c0 = arith.constant 0 : index
    %c0_1 = arith.constant 0 : index
    %3 = vector.load %arg2[%c0, %c0_1] : memref<8x128xf32, #tpu.memory_space<vmem>>, vector<8x128xf32>
    %c0_2 = arith.constant 0 : index
    %c0_3 = arith.constant 0 : index
    %4 = vector.load %arg3[%c0_2, %c0_3] : memref<128x128xf32, #tpu.memory_space<vmem>>, vector<128x128xf32>
    %cst = arith.constant dense<0.000000e+00> : vector<8x128xf32>
    %5 = tpu.matmul %3, %4, %cst {dimension_numbers = #tpu.dot_dimension_numbers<[1], [0], [0], [1], [0, 0, 1, 1], [], []>} : vector<8x128xf32>, vector<128x128xf32>, vector<8x128xf32> -> vector<8x128xf32>
    %c0_4 = arith.constant 0 : index
    %c0_5 = arith.constant 0 : index
    %6 = vector.load %arg4[%c0_4, %c0_5] : memref<1x128xf32, #tpu.memory_space<vmem>>, vector<1x128xf32>
    %7 = vector.broadcast %6 : vector<1x128xf32> to vector<8x128xf32>
    %8 = arith.addf %5, %7 : vector<8x128xf32>
    %c0_6 = arith.constant 0 : index
    %c0_7 = arith.constant 0 : index
    %9 = vector.load %arg7[%c0_6, %c0_7] : memref<8x128xf32, #tpu.memory_space<vmem>>, vector<8x128xf32>
    tpu.vector_store %arg7[%c0_6, %c0_7], %8 {strides = array<i32>} : memref<8x128xf32, #tpu.memory_space<vmem>>, vector<8x128xf32>,
    %c0_8 = arith.constant 0 : index
    %c0_9 = arith.constant 0 : index
    %10 = vector.load %arg9[%c0_8, %c0_9] : memref<8x128xf32, #tpu.memory_space<vmem>>, vector<8x128xf32>
    %c0_10 = arith.constant 0 : index
    %c0_11 = arith.constant 0 : index
    %11 = vector.load %arg5[%c0_10, %c0_11] : memref<128x128xf32, #tpu.memory_space<vmem>>, vector<128x128xf32>
    %cst_12 = arith.constant dense<0.000000e+00> : vector<8x128xf32>
    %12 = tpu.matmul %8, %11, %cst_12 {dimension_numbers = #tpu.dot_dimension_numbers<[1], [0], [0], [1], [0, 0, 1, 1], [], []>} : vector<8x128xf32>, vector<128x128xf32>, vector<8x128xf32> -> vector<8x128xf32>
    %13 = arith.addf %10, %12 : vector<8x128xf32>
    %c0_13 = arith.constant 0 : index
    %c0_14 = arith.constant 0 : index
    %14 = vector.load %arg9[%c0_13, %c0_14] : memref<8x128xf32, #tpu.memory_space<vmem>>, vector<8x128xf32>
    tpu.vector_store %arg9[%c0_13, %c0_14], %13 {strides = array<i32>} : memref<8x128xf32, #tpu.memory_space<vmem>>, vector<8x128xf32>,
    %c1_i32 = arith.constant 1 : i32
    %15 = arith.cmpi eq, %arg1, %c1_i32 : i32
    %16 = arith.extui %15 : i1 to i32
    %c0_i32_15 = arith.constant 0 : i32
    %17 = arith.cmpi ne, %16, %c0_i32_15 : i32
    scf.if %17 {
      %c0_16 = arith.constant 0 : index
      %c0_17 = arith.constant 0 : index
      %18 = vector.load %arg9[%c0_16, %c0_17] : memref<8x128xf32, #tpu.memory_space<vmem>>, vector<8x128xf32>
      %c0_18 = arith.constant 0 : index
      %c0_19 = arith.constant 0 : index
      %19 = vector.load %arg6[%c0_18, %c0_19] : memref<1x128xf32, #tpu.memory_space<vmem>>, vector<1x128xf32>
      %20 = vector.broadcast %19 : vector<1x128xf32> to vector<8x128xf32>
      %21 = arith.addf %18, %20 : vector<8x128xf32>
      %c0_20 = arith.constant 0 : index
      %c0_21 = arith.constant 0 : index
      %22 = vector.load %arg8[%c0_20, %c0_21] : memref<8x128xf32, #tpu.memory_space<vmem>>, vector<8x128xf32>
      tpu.vector_store %arg8[%c0_20, %c0_21], %21 {strides = array<i32>} : memref<8x128xf32, #tpu.memory_space<vmem>>, vector<8x128xf32>,
    } else {
    }
    return
  }
  func.func @transform_0(%arg0: i32, %arg1: i32) -> (i32, i32) {
    %c0_i32 = arith.constant 0 : i32
    %c0_i32_0 = arith.constant 0 : i32
    return %arg0, %c0_i32 : i32, i32
  }
  func.func @transform_1(%arg0: i32, %arg1: i32) -> (i32, i32) {
    %c0_i32 = arith.constant 0 : i32
    %c0_i32_0 = arith.constant 0 : i32
    return %c0_i32, %arg1 : i32, i32
  }
  func.func @transform_2(%arg0: i32, %arg1: i32) -> (i32, i32) {
    %c0_i32 = arith.constant 0 : i32
    %c0_i32_0 = arith.constant 0 : i32
    return %c0_i32, %arg1 : i32, i32
  }
  func.func @transform_3(%arg0: i32, %arg1: i32) -> (i32, i32) {
    %c0_i32 = arith.constant 0 : i32
    %c0_i32_0 = arith.constant 0 : i32
    return %arg1, %c0_i32 : i32, i32
  }
  func.func @transform_4(%arg0: i32, %arg1: i32) -> (i32, i32) {
    %c0_i32 = arith.constant 0 : i32
    %c0_i32_0 = arith.constant 0 : i32
    %c0_i32_1 = arith.constant 0 : i32
    return %c0_i32, %c0_i32_0 : i32, i32
  }
  func.func @transform_5(%arg0: i32, %arg1: i32) -> (i32, i32) {
    %c0_i32 = arith.constant 0 : i32
    return %arg0, %arg1 : i32, i32
  }
  func.func @transform_6(%arg0: i32, %arg1: i32) -> (i32, i32) {
    %c0_i32 = arith.constant 0 : i32
    %c0_i32_0 = arith.constant 0 : i32
    return %arg0, %c0_i32 : i32, i32
  }
}

</mosaic_0001>

<llo_original>
// kernel: tpu_custom_call.1
$region0: #{tpu_custom_call.1}
  #allocation0 [shape = 'u32[]', space=smem, size = 0x4, offset = 0x4, fixed_abs, tag = 'smem constant byte address 0x4 - core index']
  #allocation1 [shape = 'u32[72,128]{1,0:T(1,128)}', space=vmem, size = 0x9000, scoped, tag = 'internal scratch']
  #allocation2 [shape = 'f32[8,128]{1,0:T(8,128)}', space=vmem, size = 0x1000, scoped, tag = 'scratch operand']
  %s0 = inlined_call_operand.hbm [shape: f32[16,128], index: 0, kind: input, shape index: {}]
  %s1 = inlined_call_operand.hbm [shape: f32[128,256], index: 1, kind: input, shape index: {}]
  %s2 = inlined_call_operand.hbm [shape: f32[1,256], index: 2, kind: input, shape index: {}]
  %s3 = inlined_call_operand.hbm [shape: f32[256,128], index: 3, kind: input, shape index: {}]
  %s4 = inlined_call_operand.vmem [shape: f32[1,128], index: 4, kind: input, shape index: {}]
  %s5 = inlined_call_operand.hbm [shape: f32[16,256], index: 5, kind: output, shape index: {0}]
  %s6 = inlined_call_operand.hbm [shape: f32[16,128], index: 6, kind: output, shape index: {1}]
  %7 = xla_tuple %s5, %s6
  %s8 = sld [smem:[#allocation0]]
  $region85: #{tpu_custom_call.1} parent=0
    _
  %s10 = ssub.s32 1, %s8
  %s11 = scalar_select 0, %s10, %s8
  $region1: #{tpu_custom_call.1} parent=0
    #allocation3 [shape = 'u8[8192]{0}', space=vmem, size = 0x2000, scoped, tag = 'input window, operand 0']
    #allocation4 [shape = 's32[2]{0}', space=sflag, size = 0x8, scoped, tag = 'scoped memory for tpu_custom_call.1']
    #allocation5 [shape = 's32[2]{0}', space=sflag, size = 0x8, scoped, tag = 'scoped memory for tpu_custom_call.1']
    #allocation6 [shape = 'u8[131072]{0}', space=vmem, size = 0x20000, scoped, tag = 'input window, operand 1']
    #allocation7 [shape = 's32[2]{0}', space=sflag, size = 0x8, scoped, tag = 'scoped memory for tpu_custom_call.1']
    #allocation8 [shape = 'u8[1024]{0}', space=vmem, size = 0x400, scoped, tag = 'input window, operand 2']
    #allocation9 [shape = 'u8[131072]{0}', space=vmem, size = 0x20000, scoped, tag = 'input window, operand 3']
    #allocation10 [shape = 's32[2]{0}', space=sflag, size = 0x8, scoped, tag = 'scoped memory for tpu_custom_call.1']
    #allocation11 [shape = 'u8[8192]{0}', space=vmem, size = 0x2000, scoped, tag = 'output window, operand 0']
    #allocation12 [shape = 'u8[8192]{0}', space=vmem, size = 0x2000, scoped, tag = 'output window, operand 1']
    #allocation13 [shape = 's32[2]{0}', space=sflag, size = 0x8, scoped, tag = 'scoped memory for tpu_custom_call.1']
    %12 = vsyncpa [#allocation4], 0
    %s13 = scalar_lea.sflag [#allocation4], 1
    %14 = vsyncpa %s13, 0
    %15 = vsyncpa [#allocation7], 0
    %s16 = scalar_lea.sflag [#allocation7], 1
    %17 = vsyncpa %s16, 0
    %18 = vsyncpa [#allocation10], 0
    %s19 = scalar_lea.sflag [#allocation10], 1
    %20 = vsyncpa %s19, 0
    %21 = vsyncpa [#allocation5], 0
    %s22 = scalar_lea.sflag [#allocation5], 1
    %23 = vsyncpa %s22, 0
    %24 = vsyncpa [#allocation13], 0
    %s25 = scalar_lea.sflag [#allocation13], 1
    %26 = vsyncpa %s25, 0
    loop: start=0, step=1, limit=6
    $region2: #{tpu_custom_call.1} parent=1 // loop_pre_header
      _
    $region3: #{tpu_custom_call.1} parent=1 // loop_header
      %s28 = sphi 0, %s32
      %p29 = scmp.ge.s32.totalorder %s28, 6
      %s35 = sphi 0, %s47
      %s36 = sphi 0, %s43
      %s37 = sphi 0, %s35
      %s38 = sphi 0, %s36
      %s39 = sphi 0, %s37
      %s40 = sphi 0, %s38
      %s50 = sphi 0, %s52
      %s53 = sphi 0, %s50
      %s54 = sphi 0, %s53
      %s70 = sphi 0, %s54
      %s76 = sphi 0, %s78
      %s79 = sphi 0, %s76
      %s80 = sphi 0, %s79
      %s96 = sphi 0, %s80
      %s102 = sphi 0, %s104
      %s105 = sphi 0, %s102
      %s106 = sphi 0, %s105
      %s122 = sphi 0, %s106
      %s128 = sphi 0, %s130
      %s131 = sphi 0, %s128
      %s132 = sphi 0, %s131
      %s148 = sphi 0, %s132
      %s152 = sphi 0, %s152
      %s154 = sphi 0, %s152
      %s155 = sphi 0, %s154
      %s169 = sphi 0, %s155
      %s177 = sphi 0, %s179
      %s180 = sphi 0, %s177
      %s181 = sphi 0, %s180
      %s197 = sphi 0, %s181
      %s203 = sphi 0, %s205
      %s206 = sphi 0, %s203
      %s207 = sphi 0, %s206
      %s223 = sphi 0, %s207
    $region4: #{tpu_custom_call.1} parent=1 // loop_header_branch
      %31 = sbr.rel (%p29) target = $region8
    $region5: #{tpu_custom_call.1} parent=1 // loop_body
      %s33 = ssub.s32 %s28, 1
      %s34 = ssub.s32 %s28, 2
      %s41 = sadd.s32 1, %s36
      %p42 = scmp.ge.s32.totalorder %s41, 2
      %s43 = scalar_select %p42, 0, %s41
      %s44 = sadd.s32 1, %s35
      %s45 = scalar_select %p42, %s44, %s35
      %p46 = scmp.ge.s32.totalorder %s45, 2
      %s47 = scalar_select %p46, 0, %s45
      %s48 = ssub.s32 %s35, %s47
      %p49 = scmp.eq.s32.totalorder %s48, 0
      %s51 = sadd.s32 %s50, 1
      %s52 = scalar_select %p49, %s50, %s51
      %p55 = pneg %p49
      %p56 = scmp.eq.s32.totalorder %s28, 3
      %p57 = por %p55, %p56
      %p58 = scmp.ne.s32.totalorder %s50, %s53
      %p59 = scmp.eq.s32.totalorder %s28, 0
      %p60 = por %p58, %p59
      %p61 = scmp.ne.s32.totalorder %s50, %s53
      %p62 = scmp.eq.s32.totalorder %s33, 3
      %p63 = por %p61, %p62
      %p64 = scmp.ne.s32.totalorder %s53, %s54
      %p65 = scmp.eq.s32.totalorder %s33, 0
      %p66 = por %p64, %p65
      %p67 = scmp.ne.s32.totalorder %s53, %s54
      %p68 = scmp.eq.s32.totalorder %s34, 3
      %p69 = por %p67, %p68
      %p71 = scmp.ne.s32.totalorder %s54, %s70
      %p72 = scmp.eq.s32.totalorder %s34, 0
      %p73 = por %p71, %p72
      %s74 = ssub.s32 %s36, %s43
      %p75 = scmp.eq.s32.totalorder %s74, 0
      %s77 = sadd.s32 %s76, 1
      %s78 = scalar_select %p75, %s76, %s77
      %p81 = pneg %p75
      %p82 = scmp.eq.s32.totalorder %s28, 3
      %p83 = por %p81, %p82
      %p84 = scmp.ne.s32.totalorder %s76, %s79
      %p85 = scmp.eq.s32.totalorder %s28, 0
      %p86 = por %p84, %p85
      %p87 = scmp.ne.s32.totalorder %s76, %s79
      %p88 = scmp.eq.s32.totalorder %s33, 3
      %p89 = por %p87, %p88
      %p90 = scmp.ne.s32.totalorder %s79, %s80
      %p91 = scmp.eq.s32.totalorder %s33, 0
      %p92 = por %p90, %p91
      %p93 = scmp.ne.s32.totalorder %s79, %s80
      %p94 = scmp.eq.s32.totalorder %s34, 3
      %p95 = por %p93, %p94
      %p97 = scmp.ne.s32.totalorder %s80, %s96
      %p98 = scmp.eq.s32.totalorder %s34, 0
      %p99 = por %p97, %p98
      %s100 = ssub.s32 %s36, %s43
      %p101 = scmp.eq.s32.totalorder %s100, 0
      %s103 = sadd.s32 %s102, 1
      %s104 = scalar_select %p101, %s102, %s103
      %p107 = pneg %p101
      %p108 = scmp.eq.s32.totalorder %s28, 3
      %p109 = por %p107, %p108
      %p110 = scmp.ne.s32.totalorder %s102, %s105
      %p111 = scmp.eq.s32.totalorder %s28, 0
      %p112 = por %p110, %p111
      %p113 = scmp.ne.s32.totalorder %s102, %s105
      %p114 = scmp.eq.s32.totalorder %s33, 3
      %p115 = por %p113, %p114
      %p116 = scmp.ne.s32.totalorder %s105, %s106
      %p117 = scmp.eq.s32.totalorder %s33, 0
      %p118 = por %p116, %p117
      %p119 = scmp.ne.s32.totalorder %s105, %s106
      %p120 = scmp.eq.s32.totalorder %s34, 3
      %p121 = por %p119, %p120
      %p123 = scmp.ne.s32.totalorder %s106, %s122
      %p124 = scmp.eq.s32.totalorder %s34, 0
      %p125 = por %p123, %p124
      %s126 = ssub.s32 %s36, %s43
      %p127 = scmp.eq.s32.totalorder %s126, 0
      %s129 = sadd.s32 %s128, 1
      %s130 = scalar_select %p127, %s128, %s129
      %p133 = pneg %p127
      %p134 = scmp.eq.s32.totalorder %s28, 3
      %p135 = por %p133, %p134
      %p136 = scmp.ne.s32.totalorder %s128, %s131
      %p137 = scmp.eq.s32.totalorder %s28, 0
      %p138 = por %p136, %p137
      %p139 = scmp.ne.s32.totalorder %s128, %s131
      %p140 = scmp.eq.s32.totalorder %s33, 3
      %p141 = por %p139, %p140
      %p142 = scmp.ne.s32.totalorder %s131, %s132
      %p143 = scmp.eq.s32.totalorder %s33, 0
      %p144 = por %p142, %p143
      %p145 = scmp.ne.s32.totalorder %s131, %s132
      %p146 = scmp.eq.s32.totalorder %s34, 3
      %p147 = por %p145, %p146
      %p149 = scmp.ne.s32.totalorder %s132, %s148
      %p150 = scmp.eq.s32.totalorder %s34, 0
      %p151 = por %p149, %p150
      %s153 = sadd.s32 %s152, 1
      %p156 = scmp.eq.s32.totalorder %s28, 3
      %p157 = scmp.ne.s32.totalorder %s152, %s154
      %p158 = scmp.eq.s32.totalorder %s28, 0
      %p159 = por %p157, %p158
      %p160 = scmp.ne.s32.totalorder %s152, %s154
      %p161 = scmp.eq.s32.totalorder %s33, 3
      %p162 = por %p160, %p161
      %p163 = scmp.ne.s32.totalorder %s154, %s155
      %p164 = scmp.eq.s32.totalorder %s33, 0
      %p165 = por %p163, %p164
      %p166 = scmp.ne.s32.totalorder %s154, %s155
      %p167 = scmp.eq.s32.totalorder %s34, 3
      %p168 = por %p166, %p167
      %p170 = scmp.ne.s32.totalorder %s155, %s169
      %p171 = scmp.eq.s32.totalorder %s34, 0
      %p172 = por %p170, %p171
      %s173 = ssub.s32 %s35, %s47
      %s174 = ssub.s32 %s36, %s43
      %s175 = sor.u32 %s173, %s174
      %p176 = scmp.eq.s32.totalorder %s175, 0
      %s178 = sadd.s32 %s177, 1
      %s179 = scalar_select %p176, %s177, %s178
      %p182 = pneg %p176
      %p183 = scmp.eq.s32.totalorder %s28, 3
      %p184 = por %p182, %p183
      %p185 = scmp.ne.s32.totalorder %s177, %s180
      %p186 = scmp.eq.s32.totalorder %s28, 0
      %p187 = por %p185, %p186
      %p188 = scmp.ne.s32.totalorder %s177, %s180
      %p189 = scmp.eq.s32.totalorder %s33, 3
      %p190 = por %p188, %p189
      %p191 = scmp.ne.s32.totalorder %s180, %s181
      %p192 = scmp.eq.s32.totalorder %s33, 0
      %p193 = por %p191, %p192
      %p194 = scmp.ne.s32.totalorder %s180, %s181
      %p195 = scmp.eq.s32.totalorder %s34, 3
      %p196 = por %p194, %p195
      %p198 = scmp.ne.s32.totalorder %s181, %s197
      %p199 = scmp.eq.s32.totalorder %s34, 0
      %p200 = por %p198, %p199
      %s201 = ssub.s32 %s35, %s47
      %p202 = scmp.eq.s32.totalorder %s201, 0
      %s204 = sadd.s32 %s203, 1
      %s205 = scalar_select %p202, %s203, %s204
      %p208 = pneg %p202
      %p209 = scmp.eq.s32.totalorder %s28, 3
      %p210 = por %p208, %p209
      %p211 = scmp.ne.s32.totalorder %s203, %s206
      %p212 = scmp.eq.s32.totalorder %s28, 0
      %p213 = por %p211, %p212
      %p214 = scmp.ne.s32.totalorder %s203, %s206
      %p215 = scmp.eq.s32.totalorder %s33, 3
      %p216 = por %p214, %p215
      %p217 = scmp.ne.s32.totalorder %s206, %s207
      %p218 = scmp.eq.s32.totalorder %s33, 0
      %p219 = por %p217, %p218
      %p220 = scmp.ne.s32.totalorder %s206, %s207
      %p221 = scmp.eq.s32.totalorder %s34, 3
      %p222 = por %p220, %p221
      %p224 = scmp.ne.s32.totalorder %s207, %s223
      %p225 = scmp.eq.s32.totalorder %s34, 0
      %p226 = por %p224, %p225
      %p227 = scmp.le.s32.totalorder 1, %s28
      %p228 = scmp.lt.s32.totalorder %s28, 5
      %p229 = pnand %p227, %p228
      %p230 = pneg %p229
      // Predicated region
      $region9: #{tpu_custom_call.1} parent=5 // pred_check
        _
      $region10: #{tpu_custom_call.1} parent=5 // pred_check_branch
        %232 = sbr.rel (%p229) target = $region12
      $region11: #{tpu_custom_call.1} parent=5 // pred_region
        %s233 = ssub.s32 %s28, 1
        // Predicated region
        $region13: #{tpu_custom_call.1} parent=11 // pred_check
          %p234 = pneg %p165
        $region14: #{tpu_custom_call.1} parent=11 // pred_check_branch
          %236 = sbr.rel (%p234) target = $region16
        $region15: #{tpu_custom_call.1} parent=11 // pred_region
          _
        $region16: #{tpu_custom_call.1} parent=11 // pred_fallthru
          _
      $region12: #{tpu_custom_call.1} parent=5 // pred_fallthru
        _
      %p237 = scmp.lt.s32.totalorder %s28, 4
      // Predicated region
      $region17: #{tpu_custom_call.1} parent=5 // pred_check
        %p238 = pneg %p237
      $region18: #{tpu_custom_call.1} parent=5 // pred_check_branch
        %240 = sbr.rel (%p238) target = $region20
      $region19: #{tpu_custom_call.1} parent=5 // pred_region
        // Predicated region
        $region21: #{tpu_custom_call.1} parent=19 // pred_check
          %p241 = pneg %p60
        $region22: #{tpu_custom_call.1} parent=19 // pred_check_branch
          %243 = sbr.rel (%p241) target = $region24
        $region23: #{tpu_custom_call.1} parent=19 // pred_region
          %s244 = sand.u32 %s50, 1
          %s245 = scalar_lea.sflag [#allocation4], %s244
          %s246 = sand.u32 %s50, 1
          %s247 = smul.addr %s246, 8
          %s248 = scalar_lea.vmem [#allocation3], %s247
          %250 = vsyncadd %s245, 0
          %s251 = smul.addr %s35, 8
          %s252 = scalar_lea.hbm %s0, %s251
          %s254 = sshll.u32 %s252, 4
          %s255 = int_to_ptr.hbm [resolvable:$true] %s254
          %s256 = sshll.u32 %s248, 4
          %s257 = int_to_ptr.vmem [resolvable:$true] %s256
          %259 = dma.hbm_to_vmem [thread:$0]  %s255, 128, %s257, %s245
        $region24: #{tpu_custom_call.1} parent=19 // pred_fallthru
          _
        // Predicated region
        $region25: #{tpu_custom_call.1} parent=19 // pred_check
          %p260 = pneg %p86
        $region26: #{tpu_custom_call.1} parent=19 // pred_check_branch
          %262 = sbr.rel (%p260) target = $region28
        $region27: #{tpu_custom_call.1} parent=19 // pred_region
          %s263 = sand.u32 %s28, 1
          %s264 = scalar_lea.sflag [#allocation7], %s263
          %s265 = sand.u32 %s76, 1
          %s266 = smul.addr %s265, 128
          %s267 = scalar_lea.vmem [#allocation6], %s266
          %269 = vsyncadd %s264, 0
          %s270 = smul.addr %s36, 8
          %s271 = scalar_lea.hbm %s1, %s270
          %s272 = sshll.u32 %s271, 4
          %s273 = int_to_ptr.hbm [resolvable:$true] %s272
          %s274 = sshll.u32 %s267, 4
          %s275 = int_to_ptr.vmem [resolvable:$true] %s274
          %280 = dma.hbm_to_vmem [thread:$0]  %s273, 2048, %s275, %s264, 256, 128, 8
        $region28: #{tpu_custom_call.1} parent=19 // pred_fallthru
          _
        // Predicated region
        $region29: #{tpu_custom_call.1} parent=19 // pred_check
          %p281 = pneg %p112
        $region30: #{tpu_custom_call.1} parent=19 // pred_check_branch
          %283 = sbr.rel (%p281) target = $region32
        $region31: #{tpu_custom_call.1} parent=19 // pred_region
          %s284 = sand.u32 %s28, 1
          %s285 = scalar_lea.sflag [#allocation7], %s284
          %s286 = sand.u32 %s102, 1
          %s287 = scalar_lea.vmem [#allocation8], %s286
          %289 = vsyncadd %s285, 0
          %s290 = scalar_lea.hbm %s2, %s36
          %s292 = sshll.u32 %s290, 4
          %s293 = int_to_ptr.hbm [resolvable:$true] %s292
          %s294 = sshll.u32 %s287, 4
          %s295 = int_to_ptr.vmem [resolvable:$true] %s294
          %297 = dma.hbm_to_vmem [thread:$0]  %s293, 16, %s295, %s285
        $region32: #{tpu_custom_call.1} parent=19 // pred_fallthru
          _
        // Predicated region
        $region33: #{tpu_custom_call.1} parent=19 // pred_check
          %p298 = pneg %p138
        $region34: #{tpu_custom_call.1} parent=19 // pred_check_branch
          %300 = sbr.rel (%p298) target = $region36
        $region35: #{tpu_custom_call.1} parent=19 // pred_region
          %s301 = sand.u32 %s128, 1
          %s302 = scalar_lea.sflag [#allocation10], %s301
          %s303 = sand.u32 %s128, 1
          %s304 = smul.addr %s303, 128
          %s305 = scalar_lea.vmem [#allocation9], %s304
          %s306 = smul.u32 16, %s36
          %308 = vsyncadd %s302, 0
          %s309 = smul.addr %s306, 8
          %s310 = scalar_lea.hbm %s3, %s309
          %s311 = sshll.u32 %s310, 4
          %s312 = int_to_ptr.hbm [resolvable:$true] %s311
          %s313 = sshll.u32 %s305, 4
          %s314 = int_to_ptr.vmem [resolvable:$true] %s313
          %319 = dma.hbm_to_vmem [thread:$0]  %s312, 2048, %s314, %s302, 128, 128, 8
        $region36: #{tpu_custom_call.1} parent=19 // pred_fallthru
          _
      $region20: #{tpu_custom_call.1} parent=5 // pred_fallthru
        _
      %p320 = scmp.le.s32.totalorder 1, %s28
      %p321 = scmp.lt.s32.totalorder %s28, 5
      %p322 = pnand %p320, %p321
      %p323 = pneg %p322
      // Predicated region
      $region37: #{tpu_custom_call.1} parent=5 // pred_check
        _
      $region38: #{tpu_custom_call.1} parent=5 // pred_check_branch
        %325 = sbr.rel (%p322) target = $region40
      $region39: #{tpu_custom_call.1} parent=5 // pred_region
        %s326 = ssub.s32 %s28, 1
        %s327 = sand.u32 %s53, 1
        %s328 = scalar_lea.sflag [#allocation4], %s327
        %s329 = sand.u32 %s53, 1
        %s330 = smul.addr %s329, 8
        %s331 = scalar_lea.vmem [#allocation3], %s330
        // Predicated region
        $region41: #{tpu_custom_call.1} parent=39 // pred_check
          %p332 = pneg %p66
        $region42: #{tpu_custom_call.1} parent=39 // pred_check_branch
          %334 = sbr.rel (%p332) target = $region44
        $region43: #{tpu_custom_call.1} parent=39 // pred_region
          %336 = dma.done %s328, 128
        $region44: #{tpu_custom_call.1} parent=39 // pred_fallthru
          _
        %s337 = sand.u32 %s33, 1
        %s338 = scalar_lea.sflag [#allocation7], %s337
        %s339 = sand.u32 %s79, 1
        %s340 = smul.addr %s339, 128
        %s341 = scalar_lea.vmem [#allocation6], %s340
        // Predicated region
        $region45: #{tpu_custom_call.1} parent=39 // pred_check
          %p342 = pneg %p92
        $region46: #{tpu_custom_call.1} parent=39 // pred_check_branch
          %344 = sbr.rel (%p342) target = $region48
        $region47: #{tpu_custom_call.1} parent=39 // pred_region
          %346 = dma.done %s338, 2048
        $region48: #{tpu_custom_call.1} parent=39 // pred_fallthru
          _
        %s347 = sand.u32 %s33, 1
        %s348 = scalar_lea.sflag [#allocation7], %s347
        %s349 = sand.u32 %s105, 1
        %s350 = scalar_lea.vmem [#allocation8], %s349
        // Predicated region
        $region49: #{tpu_custom_call.1} parent=39 // pred_check
          %p351 = pneg %p118
        $region50: #{tpu_custom_call.1} parent=39 // pred_check_branch
          %353 = sbr.rel (%p351) target = $region52
        $region51: #{tpu_custom_call.1} parent=39 // pred_region
          %355 = dma.done %s348, 16
        $region52: #{tpu_custom_call.1} parent=39 // pred_fallthru
          _
        %s356 = sand.u32 %s131, 1
        %s357 = scalar_lea.sflag [#allocation10], %s356
        %s358 = sand.u32 %s131, 1
        %s359 = smul.addr %s358, 128
        %s360 = scalar_lea.vmem [#allocation9], %s359
        // Predicated region
        $region53: #{tpu_custom_call.1} parent=39 // pred_check
          %p361 = pneg %p144
        $region54: #{tpu_custom_call.1} parent=39 // pred_check_branch
          %363 = sbr.rel (%p361) target = $region56
        $region55: #{tpu_custom_call.1} parent=39 // pred_region
          %365 = dma.done %s357, 2048
        $region56: #{tpu_custom_call.1} parent=39 // pred_fallthru
          _
        %s366 = sand.u32 %s53, 1
        %s367 = scalar_lea.sflag [#allocation4], %s366
        %s368 = sand.u32 %s53, 1
        %s369 = smul.addr %s368, 8
        %s370 = scalar_lea.vmem [#allocation3], %s369
        %p371 = pneg %p66
        %p372 = pneg %p63
        %s373 = sand.u32 %s33, 1
        %s374 = scalar_lea.sflag [#allocation7], %s373
        %s375 = sand.u32 %s79, 1
        %s376 = smul.addr %s375, 128
        %s377 = scalar_lea.vmem [#allocation6], %s376
        %p378 = pneg %p92
        %p379 = pneg %p89
        %s380 = sand.u32 %s33, 1
        %s381 = scalar_lea.sflag [#allocation7], %s380
        %s382 = sand.u32 %s105, 1
        %s383 = scalar_lea.vmem [#allocation8], %s382
        %p384 = pneg %p118
        %p385 = pneg %p115
        %s386 = sand.u32 %s131, 1
        %s387 = scalar_lea.sflag [#allocation10], %s386
        %s388 = sand.u32 %s131, 1
        %s389 = smul.addr %s388, 128
        %s390 = scalar_lea.vmem [#allocation9], %s389
        %p391 = pneg %p144
        %p392 = pneg %p141
        %p393 = pneg %p165
        %p394 = pneg %p162
        %p395 = pneg %p193
        %p396 = pneg %p190
        %s397 = sand.u32 %s180, 1
        %s398 = scalar_lea.sflag [#allocation5], %s397
        %s399 = sand.u32 %s180, 1
        %s400 = smul.addr %s399, 8
        %s401 = scalar_lea.vmem [#allocation11], %s400
        %p402 = pneg %p219
        %p403 = pneg %p216
        %s404 = sand.u32 %s206, 1
        %s405 = scalar_lea.sflag [#allocation13], %s404
        %s406 = sand.u32 %s206, 1
        %s407 = smul.addr %s406, 8
        %s408 = scalar_lea.vmem [#allocation12], %s407
        %s409 = smul.u32 16, %s38
        %p410 = scmp.eq.s32.totalorder %s38, 0
        // Predicated region
        $region57: #{tpu_custom_call.1} parent=39 // pred_check
          %p411 = pneg %p410
        $region58: #{tpu_custom_call.1} parent=39 // pred_check_branch
          %413 = sbr.rel (%p411) target = $region60
        $region59: #{tpu_custom_call.1} parent=39 // pred_region
          %414 = vst [vmem:[#allocation2] sm:$0xff] 0.0
        $region60: #{tpu_custom_call.1} parent=39 // pred_fallthru
          _
        %v415 = vld [vmem:[%s331] sm:$0xff]
        %v416 = vld [vmem:[%s341] sm:$0xff]
        %v417 = vld [vmem:[%s341 + $0x8] sm:$0xff]
        %v418 = vld [vmem:[%s341 + $0x10] sm:$0xff]
        %v419 = vld [vmem:[%s341 + $0x18] sm:$0xff]
        %v420 = vld [vmem:[%s341 + $0x20] sm:$0xff]
        %v421 = vld [vmem:[%s341 + $0x28] sm:$0xff]
        %v422 = vld [vmem:[%s341 + $0x30] sm:$0xff]
        %v423 = vld [vmem:[%s341 + $0x38] sm:$0xff]
        %v424 = vld [vmem:[%s341 + $0x40] sm:$0xff]
        %v425 = vld [vmem:[%s341 + $0x48] sm:$0xff]
        %v426 = vld [vmem:[%s341 + $0x50] sm:$0xff]
        %v427 = vld [vmem:[%s341 + $0x58] sm:$0xff]
        %v428 = vld [vmem:[%s341 + $0x60] sm:$0xff]
        %v429 = vld [vmem:[%s341 + $0x68] sm:$0xff]
        %v430 = vld [vmem:[%s341 + $0x70] sm:$0xff]
        %v431 = vld [vmem:[%s341 + $0x78] sm:$0xff]
        %v432 = vld [vmem:[%s350] sm:$0x1]
        %v434 = vperm.slane %v432, 0
        %436 = vmatpush.msra.mxu0 %v431
        %437 = vmatpush.msra.mxu0 %v430
        %438 = vmatpush.msra.mxu0 %v429
        %439 = vmatpush.msra.mxu0 %v428
        %440 = vmatpush.msra.mxu0 %v427
        %441 = vmatpush.msra.mxu0 %v426
        %442 = vmatpush.msra.mxu0 %v425
        %443 = vmatpush.msra.mxu0 %v424
        %444 = vmatpush.msra.mxu0 %v423
        %445 = vmatpush.msra.mxu0 %v422
        %446 = vmatpush.msra.mxu0 %v421
        %447 = vmatpush.msra.mxu0 %v420
        %448 = vmatpush.msra.mxu0 %v419
        %449 = vmatpush.msra.mxu0 %v418
        %450 = vmatpush.msra.mxu0 %v417
        %451 = vmatpush.msra.mxu0 %v416
        %452 = vmatmul.f32.gmra.mxu0 %v415
        %v453 = vpop.f32.mrf.mxu0
        %v454 = vadd.f32 %v434, %v453
        %455 = vdwg.mxu0
        %456 = vst [vmem:[%s401] sm:$0xff] %v454
        %v457 = vld [vmem:[#allocation2] sm:$0xff]
        %v458 = vld [vmem:[%s360] sm:$0xff]
        %v459 = vld [vmem:[%s360 + $0x8] sm:$0xff]
        %v460 = vld [vmem:[%s360 + $0x10] sm:$0xff]
        %v461 = vld [vmem:[%s360 + $0x18] sm:$0xff]
        %v462 = vld [vmem:[%s360 + $0x20] sm:$0xff]
        %v463 = vld [vmem:[%s360 + $0x28] sm:$0xff]
        %v464 = vld [vmem:[%s360 + $0x30] sm:$0xff]
        %v465 = vld [vmem:[%s360 + $0x38] sm:$0xff]
        %v466 = vld [vmem:[%s360 + $0x40] sm:$0xff]
        %v467 = vld [vmem:[%s360 + $0x48] sm:$0xff]
        %v468 = vld [vmem:[%s360 + $0x50] sm:$0xff]
        %v469 = vld [vmem:[%s360 + $0x58] sm:$0xff]
        %v470 = vld [vmem:[%s360 + $0x60] sm:$0xff]
        %v471 = vld [vmem:[%s360 + $0x68] sm:$0xff]
        %v472 = vld [vmem:[%s360 + $0x70] sm:$0xff]
        %v473 = vld [vmem:[%s360 + $0x78] sm:$0xff]
        %474 = vmatpush.msra.mxu0 %v473
        %475 = vmatpush.msra.mxu0 %v472
        %476 = vmatpush.msra.mxu0 %v471
        %477 = vmatpush.msra.mxu0 %v470
        %478 = vmatpush.msra.mxu0 %v469
        %479 = vmatpush.msra.mxu0 %v468
        %480 = vmatpush.msra.mxu0 %v467
        %481 = vmatpush.msra.mxu0 %v466
        %482 = vmatpush.msra.mxu0 %v465
        %483 = vmatpush.msra.mxu0 %v464
        %484 = vmatpush.msra.mxu0 %v463
        %485 = vmatpush.msra.mxu0 %v462
        %486 = vmatpush.msra.mxu0 %v461
        %487 = vmatpush.msra.mxu0 %v460
        %488 = vmatpush.msra.mxu0 %v459
        %489 = vmatpush.msra.mxu0 %v458
        %490 = vmatmul.f32.gmra.mxu0 %v454
        %v491 = vpop.f32.mrf.mxu0
        %v492 = vadd.f32 0.0, %v491
        %493 = vdwg.mxu0
        %v494 = vadd.f32 %v457, %v492
        %495 = vst [vmem:[#allocation2] sm:$0xff] %v494
        %p496 = scmp.eq.s32.totalorder %s38, 1
        // Predicated region
        $region61: #{tpu_custom_call.1} parent=39 // pred_check
          %p497 = pneg %p496
        $region62: #{tpu_custom_call.1} parent=39 // pred_check_branch
          %499 = sbr.rel (%p497) target = $region64
        $region63: #{tpu_custom_call.1} parent=39 // pred_region
          %v500 = vld [vmem:[#allocation2] sm:$0xff]
          %v501 = vld [vmem:[%s4] sm:$0x1]
          %v503 = vperm.slane %v501, 0
          %v505 = vadd.f32 %v500, %v503
          %506 = vst [vmem:[%s408] sm:$0xff] %v505
        $region64: #{tpu_custom_call.1} parent=39 // pred_fallthru
          _
        %s507 = sand.u32 %s180, 1
        %s508 = scalar_lea.sflag [#allocation5], %s507
        %s509 = sand.u32 %s180, 1
        %s510 = smul.addr %s509, 8
        %s511 = scalar_lea.vmem [#allocation11], %s510
        %s512 = sand.u32 %s206, 1
        %s513 = scalar_lea.sflag [#allocation13], %s512
        %s514 = sand.u32 %s206, 1
        %s515 = smul.addr %s514, 8
        %s516 = scalar_lea.vmem [#allocation12], %s515
        // Predicated region
        $region65: #{tpu_custom_call.1} parent=39 // pred_check
          %p517 = pneg %p190
        $region66: #{tpu_custom_call.1} parent=39 // pred_check_branch
          %519 = sbr.rel (%p517) target = $region68
        $region67: #{tpu_custom_call.1} parent=39 // pred_region
          %521 = vsyncadd %s508, 0
          %s522 = smul.addr %s37, 2
          %s523 = sadd.s32 %s38, %s522
          %s524 = smul.addr %s523, 8
          %s525 = scalar_lea.hbm %s5, %s524
          %s527 = sshll.u32 %s511, 4
          %s528 = int_to_ptr.vmem [resolvable:$true] %s527
          %s529 = sshll.u32 %s525, 4
          %s530 = int_to_ptr.hbm [resolvable:$true] %s529
          %532 = dma.vmem_to_hbm [thread:$0]  %s528, 128, %s530, %s508
        $region68: #{tpu_custom_call.1} parent=39 // pred_fallthru
          _
        // Predicated region
        $region69: #{tpu_custom_call.1} parent=39 // pred_check
          %p533 = pneg %p216
        $region70: #{tpu_custom_call.1} parent=39 // pred_check_branch
          %535 = sbr.rel (%p533) target = $region72
        $region71: #{tpu_custom_call.1} parent=39 // pred_region
          %537 = vsyncadd %s513, 0
          %s538 = smul.addr %s37, 8
          %s539 = scalar_lea.hbm %s6, %s538
          %s541 = sshll.u32 %s516, 4
          %s542 = int_to_ptr.vmem [resolvable:$true] %s541
          %s543 = sshll.u32 %s539, 4
          %s544 = int_to_ptr.hbm [resolvable:$true] %s543
          %546 = dma.vmem_to_hbm [thread:$0]  %s542, 128, %s544, %s513
        $region72: #{tpu_custom_call.1} parent=39 // pred_fallthru
          _
      $region40: #{tpu_custom_call.1} parent=5 // pred_fallthru
        _
      %p547 = scmp.le.s32.totalorder 2, %s28
      // Predicated region
      $region73: #{tpu_custom_call.1} parent=5 // pred_check
        %p548 = pneg %p547
      $region74: #{tpu_custom_call.1} parent=5 // pred_check_branch
        %550 = sbr.rel (%p548) target = $region76
      $region75: #{tpu_custom_call.1} parent=5 // pred_region
        %s551 = ssub.s32 %s28, 2
        // Predicated region
        $region77: #{tpu_custom_call.1} parent=75 // pred_check
          %p552 = pneg %p196
        $region78: #{tpu_custom_call.1} parent=75 // pred_check_branch
          %554 = sbr.rel (%p552) target = $region80
        $region79: #{tpu_custom_call.1} parent=75 // pred_region
          %s555 = sand.u32 %s181, 1
          %s556 = scalar_lea.sflag [#allocation5], %s555
          %s557 = sand.u32 %s181, 1
          %s558 = smul.addr %s557, 8
          %s559 = scalar_lea.vmem [#allocation11], %s558
          %561 = dma.done %s556, 128
        $region80: #{tpu_custom_call.1} parent=75 // pred_fallthru
          _
        // Predicated region
        $region81: #{tpu_custom_call.1} parent=75 // pred_check
          %p562 = pneg %p222
        $region82: #{tpu_custom_call.1} parent=75 // pred_check_branch
          %564 = sbr.rel (%p562) target = $region84
        $region83: #{tpu_custom_call.1} parent=75 // pred_region
          %s565 = sand.u32 %s207, 1
          %s566 = scalar_lea.sflag [#allocation13], %s565
          %s567 = sand.u32 %s207, 1
          %s568 = smul.addr %s567, 8
          %s569 = scalar_lea.vmem [#allocation12], %s568
          %571 = dma.done %s566, 128
        $region84: #{tpu_custom_call.1} parent=75 // pred_fallthru
          _
      $region76: #{tpu_custom_call.1} parent=5 // pred_fallthru
        _
    $region6: #{tpu_custom_call.1} parent=1 // loop_footer
      %s32 = sadd.s32 1, %s28
    $region7: #{tpu_custom_call.1} parent=1 // loop_footer_branch
      %27 = sbr.rel target = $region3
    $region8: #{tpu_custom_call.1} parent=1 // loop_exit
      _
    %572 = vsyncpa [#allocation4], 1
    %s573 = scalar_lea.sflag [#allocation4], 1
    %574 = vsyncpa %s573, 1
    %575 = vsyncpa [#allocation7], 1
    %s576 = scalar_lea.sflag [#allocation7], 1
    %577 = vsyncpa %s576, 1
    %578 = vsyncpa [#allocation10], 1
    %s579 = scalar_lea.sflag [#allocation10], 1
    %580 = vsyncpa %s579, 1
    %581 = vsyncpa [#allocation5], 1
    %s582 = scalar_lea.sflag [#allocation5], 1
    %583 = vsyncpa %s582, 1
    %584 = vsyncpa [#allocation13], 1
    %s585 = scalar_lea.sflag [#allocation13], 1
    %586 = vsyncpa %s585, 1

</llo_original>
